<compile_context>
chip_gen: v5e
topology: v5e:2x2
jax: 0.10.0
libtpu: 0.0.40
codegen_flags: <defaults>
</compile_context>

<pallas_src>
import jax
import jax.numpy as jnp
from jax import lax
from jax.experimental import pallas as pl
from jax.experimental.pallas import tpu as pltpu

_NEG_LARGE = -1e30  # f32 bias for padded (fake) classes -> exp() == 0 in log-softmax
_SLAB = 128         # rows per in-kernel sub-slab (keeps intermediates in the vreg file)


def _make_ffnn_kernel(block_b, slab):
    """Kernel factory: process the (block_b, D) x-tile in `slab`-row sub-slabs."""
    n_slabs = block_b // slab

    def kernel(x_ref, w1_ref, b1_ref, w2_ref, b2_ref, o_ref):
        def one_slab(r0):
            xs = x_ref[pl.ds(r0, slab), :]
            # Hidden layer: x @ W1 + b1, ReLU (MXU f32 accumulate). H=32 stays
            # un-padded on purpose — kernel is DMA/overhead bound, not MXU bound.
            h = jnp.dot(xs, w1_ref[...], preferred_element_type=jnp.float32)
            h = jnp.maximum(h + b1_ref[...], 0.0)
            # Output layer over the lane-padded class dim (kept in vregs, no
            # VMEM round-trip).
            logits = jnp.dot(h.astype(w2_ref.dtype), w2_ref[...],
                             preferred_element_type=jnp.float32)
            logits = logits + b2_ref[...]  # padded classes carry a -1e30 f32 bias
            # Numerically stable log-softmax (f32 epilogue). Padded lanes:
            # exp(-1e30 - m) == 0, so they never pollute the max/sum.
            m = jnp.max(logits, axis=-1, keepdims=True)
            shifted = logits - m
            lse = jnp.log(jnp.sum(jnp.exp(shifted), axis=-1, keepdims=True))
            o_ref[pl.ds(r0, slab), :] = (shifted - lse).astype(o_ref.dtype)

        if n_slabs == 1:
            one_slab(0)
        else:
            def body(i, carry):
                one_slab(pl.multiple_of(i * slab, slab))
                return carry
            lax.fori_loop(0, n_slabs, body, None, unroll=True)

    return kernel


def _auto_block_b(B):
    """Batch tile: big enough to amortize the ~0.35us per-grid-step overhead,
    >= 2 grid steps when possible (v7x megacore shards the 'parallel' axis
    across both TensorCores), and dividing B exactly so the wrapper never pads
    the batch through HBM."""
    if B <= 128:
        return max(8, pl.cdiv(B, 8) * 8)
    for cand in (1024, 512, 256, 128):
        if B % cand == 0 and B // cand >= 2:
            return cand
    return 512 if B >= 1024 else 128  # fallback (ragged batch -> padded)


def ffnn_forward(x, w1, b1, w2, b2, *, block_b=None, use_bf16=True,
                 out_dtype=jnp.float32, return_padded=False):
    """x: [B, D], w1: [D, H], b1: [H] or [1, H], w2: [H, O], b2: [O] or [1, O].

    Returns log-probabilities of shape [B, O] in `out_dtype`
    (or the padded [Bp, OP] buffer when return_padded=True).
    """
    B, D = x.shape
    H = w1.shape[1]
    O = w2.shape[1]

    if block_b is None:
        block_b = _auto_block_b(B)
    block_b = max(8, (block_b // 8) * 8)          # sublane alignment
    Bp = pl.cdiv(B, block_b) * block_b
    OP = pl.cdiv(max(O, 128), 128) * 128          # lane-dense class dim (>=128)

    # f32 biases always (the -1e30 pad bias must never become bf16 -inf).
    b1f = jnp.asarray(b1, jnp.float32).reshape(1, H)
    b2f = jnp.asarray(b2, jnp.float32).reshape(1, O)
    b2p = jnp.full((1, OP), _NEG_LARGE, jnp.float32).at[:, :O].set(b2f)

    # MXU operand dtype: bf16 halves x/weight DMA bytes and hits the bf16 MXU
    # rate on all three generations; accumulation + epilogue stay f32.
    mat_dtype = jnp.bfloat16 if use_bf16 else jnp.float32
    w1m = w1.astype(mat_dtype)
    w2p = jnp.zeros((H, OP), mat_dtype).at[:, :O].set(w2.astype(mat_dtype))

    xp = x.astype(mat_dtype)
    if Bp != B:
        # Only hit when no tile divides B exactly; otherwise no extra HBM pass.
        xp = jnp.pad(xp, ((0, Bp - B), (0, 0)))

    slab = _SLAB if (block_b > 256 and block_b % _SLAB == 0) else block_b
    kernel = _make_ffnn_kernel(block_b, slab)

    # ---- VMEM budget: a few MiB of headroom, no artificial 32 MiB floor ----
    itm = jnp.dtype(mat_dtype).itemsize
    oitm = jnp.dtype(out_dtype).itemsize
    est = (2 * block_b * D * itm            # x tiles (double-buffered)
           + 2 * block_b * OP * oitm        # out tiles (double-buffered)
           + 2 * (D * H + H * OP) * itm     # resident weights (conservative 2x)
           + 2 * (H + OP) * 4)              # biases
    vmem_limit = int(min(max(4 * est, 2 << 20), 48 << 20))

    cost = pl.CostEstimate(
        flops=int(2 * Bp * (D * H + H * OP)),
        transcendentals=int(Bp * (OP + 1)),
        bytes_accessed=int(Bp * D * itm + (D * H + H * OP) * itm
                           + (H + OP) * 4 + Bp * OP * oitm),
    )

    out = pl.pallas_call(
        kernel,
        out_shape=jax.ShapeDtypeStruct((Bp, OP), out_dtype),
        grid_spec=pltpu.PrefetchScalarGridSpec(
            num_scalar_prefetch=0,
            grid=(Bp // block_b,),
            in_specs=[
                pl.BlockSpec((block_b, D), lambda i: (i, 0)),   # x tile (pipelined)
                pl.BlockSpec((D, H), lambda i: (0, 0)),          # W1 (VMEM-resident)
                pl.BlockSpec((1, H), lambda i: (0, 0)),          # b1 (resident)
                pl.BlockSpec((H, OP), lambda i: (0, 0)),         # W2 (resident)
                pl.BlockSpec((1, OP), lambda i: (0, 0)),         # b2 (resident)
            ],
            out_specs=pl.BlockSpec((block_b, OP), lambda i: (i, 0)),
        ),
        compiler_params=pltpu.CompilerParams(
            dimension_semantics=("parallel",),   # v7x: shard batch tiles over 2 TCs
            vmem_limit_bytes=vmem_limit,
        ),
        cost_estimate=cost,
    )(xp, w1m, b1f, w2p, b2p)

    if return_padded:
        return out
    if Bp == B:
        return out[:, :O]
    return out[:B, :O]
    # TODO(synk): for very large D/H (weights exceeding VMEM, esp. v7x 64 MiB),
    # add a trailing "arbitrary" contraction grid axis with a VMEM accumulator.


if __name__ == "__main__":
    # Shapes consistent with the module: input_dim=32, h=32, output_dim=5.
    # Batch of 256 -> auto tile 128, grid of 2 (exercises pipelining + megacore).
    B, D, H, O = 256, 32, 32, 5

    key = jax.random.PRNGKey(0)
    kx, k1, kb1, k2, kb2 = jax.random.split(key, 5)

    x = jax.random.normal(kx, (B, D), dtype=jnp.float32)
    lim1 = 1.0 / (D ** 0.5)
    w1 = jax.random.uniform(k1, (D, H), minval=-lim1, maxval=lim1, dtype=jnp.float32)
    b1 = jax.random.uniform(kb1, (1, H), minval=-lim1, maxval=lim1, dtype=jnp.float32)
    lim2 = 1.0 / (H ** 0.5)
    w2 = jax.random.uniform(k2, (H, O), minval=-lim2, maxval=lim2, dtype=jnp.float32)
    b2 = jax.random.uniform(kb2, (1, O), minval=-lim2, maxval=lim2, dtype=jnp.float32)

    # Plain-JAX reference (exact semantics of the PyTorch module's forward).
    hdn = jnp.maximum(x @ w1 + b1, 0.0)
    ref = jax.nn.log_softmax(hdn @ w2 + b2, axis=-1)

    # f32 operand path (bit-faithful to the module).
    out_f32 = ffnn_forward(x, w1, b1, w2, b2, use_bf16=False)
    jax.block_until_ready(out_f32)
    assert out_f32.shape == (B, O)
    assert jnp.allclose(out_f32, ref, atol=1e-5, rtol=1e-5)

    # Default path: bf16 MXU operands, f32 accumulate + f32 epilogue.
    out_bf16 = ffnn_forward(x, w1, b1, w2, b2)
    jax.block_until_ready(out_bf16)
    assert out_bf16.shape == (B, O)
    assert bool(jnp.all(jnp.isfinite(out_bf16)))
    assert jnp.allclose(out_bf16, ref, atol=5e-2, rtol=5e-2)

    print("KERNEL_OK")
</pallas_src>

<mosaic_0001>
module attributes {stable_mosaic.version = 11 : i64} {
  func.func @kernel(%arg0: i32, %arg1: memref<128x32xf32, #tpu.memory_space<vmem>>, %arg2: memref<32x32xf32, #tpu.memory_space<vmem>>, %arg3: memref<1x32xf32, #tpu.memory_space<vmem>>, %arg4: memref<32x128xf32, #tpu.memory_space<vmem>>, %arg5: memref<1x128xf32, #tpu.memory_space<vmem>>, %arg6: memref<128x128xf32, #tpu.memory_space<vmem>>) attributes {dimension_semantics = [#tpu.dimension_semantics<parallel>], iteration_bounds = array<i64: 2>, scalar_prefetch = 0 : i64, scratch_operands = 0 : i64, tpu.core_type = #tpu.core_type<tc>, window_params = [{transform_indices = @transform_0, window_bounds = array<i64: 128, 32>}, {pipeline_mode = #tpu.pipeline_mode<synchronous>, transform_indices = @transform_1, window_bounds = array<i64: 32, 32>}, {pipeline_mode = #tpu.pipeline_mode<synchronous>, transform_indices = @transform_2, window_bounds = array<i64: 1, 32>}, {pipeline_mode = #tpu.pipeline_mode<synchronous>, transform_indices = @transform_3, window_bounds = array<i64: 32, 128>}, {pipeline_mode = #tpu.pipeline_mode<synchronous>, transform_indices = @transform_4, window_bounds = array<i64: 1, 128>}, {transform_indices = @transform_5, window_bounds = array<i64: 128, 128>}]} {
    %c0 = arith.constant 0 : index
    %c0_0 = arith.constant 0 : index
    %0 = vector.load %arg1[%c0, %c0_0] : memref<128x32xf32, #tpu.memory_space<vmem>>, vector<128x32xf32>
    %c0_1 = arith.constant 0 : index
    %c0_2 = arith.constant 0 : index
    %1 = vector.load %arg2[%c0_1, %c0_2] : memref<32x32xf32, #tpu.memory_space<vmem>>, vector<32x32xf32>
    %cst = arith.constant dense<0.000000e+00> : vector<128x32xf32>
    %2 = tpu.matmul %0, %1, %cst {dimension_numbers = #tpu.dot_dimension_numbers<[1], [0], [0], [1], [0, 0, 1, 1], [], []>} : vector<128x32xf32>, vector<32x32xf32>, vector<128x32xf32> -> vector<128x32xf32>
    %c0_3 = arith.constant 0 : index
    %c0_4 = arith.constant 0 : index
    %3 = vector.load %arg3[%c0_3, %c0_4] : memref<1x32xf32, #tpu.memory_space<vmem>>, vector<1x32xf32>
    %4 = vector.broadcast %3 : vector<1x32xf32> to vector<128x32xf32>
    %5 = arith.addf %2, %4 : vector<128x32xf32>
    %cst_5 = arith.constant 0.000000e+00 : f32
    %6 = vector.broadcast %cst_5 : f32 to vector<128x32xf32>
    %7 = arith.maximumf %5, %6 : vector<128x32xf32>
    %c0_6 = arith.constant 0 : index
    %c0_7 = arith.constant 0 : index
    %8 = vector.load %arg4[%c0_6, %c0_7] : memref<32x128xf32, #tpu.memory_space<vmem>>, vector<32x128xf32>
    %cst_8 = arith.constant dense<0.000000e+00> : vector<128x128xf32>
    %9 = tpu.matmul %7, %8, %cst_8 {dimension_numbers = #tpu.dot_dimension_numbers<[1], [0], [0], [1], [0, 0, 1, 1], [], []>} : vector<128x32xf32>, vector<32x128xf32>, vector<128x128xf32> -> vector<128x128xf32>
    %c0_9 = arith.constant 0 : index
    %c0_10 = arith.constant 0 : index
    %10 = vector.load %arg5[%c0_9, %c0_10] : memref<1x128xf32, #tpu.memory_space<vmem>>, vector<1x128xf32>
    %11 = vector.broadcast %10 : vector<1x128xf32> to vector<128x128xf32>
    %12 = arith.addf %9, %11 : vector<128x128xf32>
    %cst_11 = arith.constant dense<0xFF800000> : vector<128xf32>
    %13 = vector.multi_reduction <maximumf>, %12, %cst_11 [1] : vector<128x128xf32> to vector<128xf32>
    %14 = vector.shape_cast %13 : vector<128xf32> to vector<128x1xf32>
    %15 = vector.broadcast %14 : vector<128x1xf32> to vector<128x128xf32>
    %16 = arith.subf %12, %15 : vector<128x128xf32>
    %17 = math.exp %16 : vector<128x128xf32>
    %cst_12 = arith.constant dense<0.000000e+00> : vector<128xf32>
    %18 = vector.multi_reduction <add>, %17, %cst_12 [1] : vector<128x128xf32> to vector<128xf32>
    %19 = vector.shape_cast %18 : vector<128xf32> to vector<128x1xf32>
    %20 = math.log %19 : vector<128x1xf32>
    %21 = vector.broadcast %20 : vector<128x1xf32> to vector<128x128xf32>
    %22 = arith.subf %16, %21 : vector<128x128xf32>
    %c0_13 = arith.constant 0 : index
    %c0_14 = arith.constant 0 : index
    %23 = vector.load %arg6[%c0_13, %c0_14] : memref<128x128xf32, #tpu.memory_space<vmem>>, vector<128x128xf32>
    tpu.vector_store %arg6[%c0_13, %c0_14], %22 {strides = array<i32>} : memref<128x128xf32, #tpu.memory_space<vmem>>, vector<128x128xf32>,
    return
  }
  func.func @transform_0(%arg0: i32) -> (i32, i32) {
    %c0_i32 = arith.constant 0 : i32
    %c0_i32_0 = arith.constant 0 : i32
    return %arg0, %c0_i32 : i32, i32
  }
  func.func @transform_1(%arg0: i32) -> (i32, i32) {
    %c0_i32 = arith.constant 0 : i32
    %c0_i32_0 = arith.constant 0 : i32
    %c0_i32_1 = arith.constant 0 : i32
    return %c0_i32, %c0_i32_0 : i32, i32
  }
  func.func @transform_2(%arg0: i32) -> (i32, i32) {
    %c0_i32 = arith.constant 0 : i32
    %c0_i32_0 = arith.constant 0 : i32
    %c0_i32_1 = arith.constant 0 : i32
    return %c0_i32, %c0_i32_0 : i32, i32
  }
  func.func @transform_3(%arg0: i32) -> (i32, i32) {
    %c0_i32 = arith.constant 0 : i32
    %c0_i32_0 = arith.constant 0 : i32
    %c0_i32_1 = arith.constant 0 : i32
    return %c0_i32, %c0_i32_0 : i32, i32
  }
  func.func @transform_4(%arg0: i32) -> (i32, i32) {
    %c0_i32 = arith.constant 0 : i32
    %c0_i32_0 = arith.constant 0 : i32
    %c0_i32_1 = arith.constant 0 : i32
    return %c0_i32, %c0_i32_0 : i32, i32
  }
  func.func @transform_5(%arg0: i32) -> (i32, i32) {
    %c0_i32 = arith.constant 0 : i32
    %c0_i32_0 = arith.constant 0 : i32
    return %arg0, %c0_i32 : i32, i32
  }
}

</mosaic_0001>

<llo_original>
// kernel: tpu_custom_call.1
$region0: #{tpu_custom_call.1}
  #allocation0 [shape = 'u32[]', space=smem, size = 0x4, offset = 0x4, fixed_abs, tag = 'smem constant byte address 0x4 - core index']
  #allocation1 [shape = 'u32[72,128]{1,0:T(1,128)}', space=vmem, size = 0x9000, scoped, tag = 'internal scratch']
  %s0 = inlined_call_operand.vmem [shape: f32[256,32], index: 0, kind: input, shape index: {}]
  %s1 = inlined_call_operand.vmem [shape: f32[32,32], index: 1, kind: input, shape index: {}]
  %s2 = inlined_call_operand.vmem [shape: f32[1,32], index: 2, kind: input, shape index: {}]
  %s3 = inlined_call_operand.vmem [shape: f32[32,128], index: 3, kind: input, shape index: {}]
  %s4 = inlined_call_operand.vmem [shape: f32[1,128], index: 4, kind: input, shape index: {}]
  %s5 = inlined_call_operand.hbm [shape: f32[256,128], index: 5, kind: output, shape index: {}]
  %s6 = sld [smem:[#allocation0]]
  $region53: #{tpu_custom_call.1} parent=0
    _
  %s8 = ssub.s32 1, %s6
  %s9 = scalar_select 0, %s8, %s6
  $region1: #{tpu_custom_call.1} parent=0
    #allocation2 [shape = 'u8[131072]{0}', space=vmem, size = 0x20000, scoped, tag = 'output window, operand 0']
    #allocation3 [shape = 's32[2]{0}', space=sflag, size = 0x8, scoped, tag = 'scoped memory for tpu_custom_call.1']
    %10 = vsyncpa [#allocation3], 0
    %s11 = scalar_lea.sflag [#allocation3], 1
    %12 = vsyncpa %s11, 0
    loop: start=0, step=1, limit=4
    $region2: #{tpu_custom_call.1} parent=1 // loop_pre_header
      _
    $region3: #{tpu_custom_call.1} parent=1 // loop_header
      %s14 = sphi 0, %s18
      %p15 = scmp.ge.s32.totalorder %s14, 4
      %s24 = sphi 0, %s26
      %s27 = sphi 0, %s24
      %s28 = sphi 0, %s27
      %s44 = sphi 0, %s28
      %s48 = sphi 0, %s48
      %s50 = sphi 0, %s48
      %s51 = sphi 0, %s50
      %s65 = sphi 0, %s51
      %s69 = sphi 0, %s69
      %s71 = sphi 0, %s69
      %s72 = sphi 0, %s71
      %s86 = sphi 0, %s72
      %s90 = sphi 0, %s90
      %s92 = sphi 0, %s90
      %s93 = sphi 0, %s92
      %s107 = sphi 0, %s93
      %s111 = sphi 0, %s111
      %s113 = sphi 0, %s111
      %s114 = sphi 0, %s113
      %s128 = sphi 0, %s114
      %s134 = sphi 0, %s136
      %s137 = sphi 0, %s134
      %s138 = sphi 0, %s137
      %s154 = sphi 0, %s138
    $region4: #{tpu_custom_call.1} parent=1 // loop_header_branch
      %17 = sbr.rel (%p15) target = $region8
    $region5: #{tpu_custom_call.1} parent=1 // loop_body
      %s19 = ssub.s32 %s14, 1
      %s20 = ssub.s32 %s14, 2
      %s21 = sadd.s32 %s14, 1
      %s22 = ssub.s32 %s14, %s21
      %p23 = scmp.eq.s32.totalorder %s22, 0
      %s25 = sadd.s32 %s24, 1
      %s26 = scalar_select %p23, %s24, %s25
      %p29 = pneg %p23
      %p30 = scmp.eq.s32.totalorder %s14, 1
      %p31 = por %p29, %p30
      %p32 = scmp.ne.s32.totalorder %s24, %s27
      %p33 = scmp.eq.s32.totalorder %s14, 0
      %p34 = por %p32, %p33
      %p35 = scmp.ne.s32.totalorder %s24, %s27
      %p36 = scmp.eq.s32.totalorder %s19, 1
      %p37 = por %p35, %p36
      %p38 = scmp.ne.s32.totalorder %s27, %s28
      %p39 = scmp.eq.s32.totalorder %s19, 0
      %p40 = por %p38, %p39
      %p41 = scmp.ne.s32.totalorder %s27, %s28
      %p42 = scmp.eq.s32.totalorder %s20, 1
      %p43 = por %p41, %p42
      %p45 = scmp.ne.s32.totalorder %s28, %s44
      %p46 = scmp.eq.s32.totalorder %s20, 0
      %p47 = por %p45, %p46
      %s49 = sadd.s32 %s48, 1
      %p52 = scmp.eq.s32.totalorder %s14, 1
      %p53 = scmp.ne.s32.totalorder %s48, %s50
      %p54 = scmp.eq.s32.totalorder %s14, 0
      %p55 = por %p53, %p54
      %p56 = scmp.ne.s32.totalorder %s48, %s50
      %p57 = scmp.eq.s32.totalorder %s19, 1
      %p58 = por %p56, %p57
      %p59 = scmp.ne.s32.totalorder %s50, %s51
      %p60 = scmp.eq.s32.totalorder %s19, 0
      %p61 = por %p59, %p60
      %p62 = scmp.ne.s32.totalorder %s50, %s51
      %p63 = scmp.eq.s32.totalorder %s20, 1
      %p64 = por %p62, %p63
      %p66 = scmp.ne.s32.totalorder %s51, %s65
      %p67 = scmp.eq.s32.totalorder %s20, 0
      %p68 = por %p66, %p67
      %s70 = sadd.s32 %s69, 1
      %p73 = scmp.eq.s32.totalorder %s14, 1
      %p74 = scmp.ne.s32.totalorder %s69, %s71
      %p75 = scmp.eq.s32.totalorder %s14, 0
      %p76 = por %p74, %p75
      %p77 = scmp.ne.s32.totalorder %s69, %s71
      %p78 = scmp.eq.s32.totalorder %s19, 1
      %p79 = por %p77, %p78
      %p80 = scmp.ne.s32.totalorder %s71, %s72
      %p81 = scmp.eq.s32.totalorder %s19, 0
      %p82 = por %p80, %p81
      %p83 = scmp.ne.s32.totalorder %s71, %s72
      %p84 = scmp.eq.s32.totalorder %s20, 1
      %p85 = por %p83, %p84
      %p87 = scmp.ne.s32.totalorder %s72, %s86
      %p88 = scmp.eq.s32.totalorder %s20, 0
      %p89 = por %p87, %p88
      %s91 = sadd.s32 %s90, 1
      %p94 = scmp.eq.s32.totalorder %s14, 1
      %p95 = scmp.ne.s32.totalorder %s90, %s92
      %p96 = scmp.eq.s32.totalorder %s14, 0
      %p97 = por %p95, %p96
      %p98 = scmp.ne.s32.totalorder %s90, %s92
      %p99 = scmp.eq.s32.totalorder %s19, 1
      %p100 = por %p98, %p99
      %p101 = scmp.ne.s32.totalorder %s92, %s93
      %p102 = scmp.eq.s32.totalorder %s19, 0
      %p103 = por %p101, %p102
      %p104 = scmp.ne.s32.totalorder %s92, %s93
      %p105 = scmp.eq.s32.totalorder %s20, 1
      %p106 = por %p104, %p105
      %p108 = scmp.ne.s32.totalorder %s93, %s107
      %p109 = scmp.eq.s32.totalorder %s20, 0
      %p110 = por %p108, %p109
      %s112 = sadd.s32 %s111, 1
      %p115 = scmp.eq.s32.totalorder %s14, 1
      %p116 = scmp.ne.s32.totalorder %s111, %s113
      %p117 = scmp.eq.s32.totalorder %s14, 0
      %p118 = por %p116, %p117
      %p119 = scmp.ne.s32.totalorder %s111, %s113
      %p120 = scmp.eq.s32.totalorder %s19, 1
      %p121 = por %p119, %p120
      %p122 = scmp.ne.s32.totalorder %s113, %s114
      %p123 = scmp.eq.s32.totalorder %s19, 0
      %p124 = por %p122, %p123
      %p125 = scmp.ne.s32.totalorder %s113, %s114
      %p126 = scmp.eq.s32.totalorder %s20, 1
      %p127 = por %p125, %p126
      %p129 = scmp.ne.s32.totalorder %s114, %s128
      %p130 = scmp.eq.s32.totalorder %s20, 0
      %p131 = por %p129, %p130
      %s132 = ssub.s32 %s14, %s21
      %p133 = scmp.eq.s32.totalorder %s132, 0
      %s135 = sadd.s32 %s134, 1
      %s136 = scalar_select %p133, %s134, %s135
      %p139 = pneg %p133
      %p140 = scmp.eq.s32.totalorder %s14, 1
      %p141 = por %p139, %p140
      %p142 = scmp.ne.s32.totalorder %s134, %s137
      %p143 = scmp.eq.s32.totalorder %s14, 0
      %p144 = por %p142, %p143
      %p145 = scmp.ne.s32.totalorder %s134, %s137
      %p146 = scmp.eq.s32.totalorder %s19, 1
      %p147 = por %p145, %p146
      %p148 = scmp.ne.s32.totalorder %s137, %s138
      %p149 = scmp.eq.s32.totalorder %s19, 0
      %p150 = por %p148, %p149
      %p151 = scmp.ne.s32.totalorder %s137, %s138
      %p152 = scmp.eq.s32.totalorder %s20, 1
      %p153 = por %p151, %p152
      %p155 = scmp.ne.s32.totalorder %s138, %s154
      %p156 = scmp.eq.s32.totalorder %s20, 0
      %p157 = por %p155, %p156
      %p158 = scmp.le.s32.totalorder 1, %s14
      %p159 = scmp.lt.s32.totalorder %s14, 3
      %p160 = pnand %p158, %p159
      %p161 = pneg %p160
      // Predicated region
      $region9: #{tpu_custom_call.1} parent=5 // pred_check
        _
      $region10: #{tpu_custom_call.1} parent=5 // pred_check_branch
        %163 = sbr.rel (%p160) target = $region12
      $region11: #{tpu_custom_call.1} parent=5 // pred_region
        %s164 = ssub.s32 %s14, 1
        // Predicated region
        $region13: #{tpu_custom_call.1} parent=11 // pred_check
          %p165 = pneg %p61
        $region14: #{tpu_custom_call.1} parent=11 // pred_check_branch
          %167 = sbr.rel (%p165) target = $region16
        $region15: #{tpu_custom_call.1} parent=11 // pred_region
          _
        $region16: #{tpu_custom_call.1} parent=11 // pred_fallthru
          _
        // Predicated region
        $region17: #{tpu_custom_call.1} parent=11 // pred_check
          %p168 = pneg %p82
        $region18: #{tpu_custom_call.1} parent=11 // pred_check_branch
          %170 = sbr.rel (%p168) target = $region20
        $region19: #{tpu_custom_call.1} parent=11 // pred_region
          _
        $region20: #{tpu_custom_call.1} parent=11 // pred_fallthru
          _
        // Predicated region
        $region21: #{tpu_custom_call.1} parent=11 // pred_check
          %p171 = pneg %p103
        $region22: #{tpu_custom_call.1} parent=11 // pred_check_branch
          %173 = sbr.rel (%p171) target = $region24
        $region23: #{tpu_custom_call.1} parent=11 // pred_region
          _
        $region24: #{tpu_custom_call.1} parent=11 // pred_fallthru
          _
        // Predicated region
        $region25: #{tpu_custom_call.1} parent=11 // pred_check
          %p174 = pneg %p124
        $region26: #{tpu_custom_call.1} parent=11 // pred_check_branch
          %176 = sbr.rel (%p174) target = $region28
        $region27: #{tpu_custom_call.1} parent=11 // pred_region
          _
        $region28: #{tpu_custom_call.1} parent=11 // pred_fallthru
          _
      $region12: #{tpu_custom_call.1} parent=5 // pred_fallthru
        _
      %p177 = scmp.lt.s32.totalorder %s14, 2
      // Predicated region
      $region29: #{tpu_custom_call.1} parent=5 // pred_check
        %p178 = pneg %p177
      $region30: #{tpu_custom_call.1} parent=5 // pred_check_branch
        %180 = sbr.rel (%p178) target = $region32
      $region31: #{tpu_custom_call.1} parent=5 // pred_region
        // Predicated region
        $region33: #{tpu_custom_call.1} parent=31 // pred_check
          %p181 = pneg %p34
        $region34: #{tpu_custom_call.1} parent=31 // pred_check_branch
          %183 = sbr.rel (%p181) target = $region36
        $region35: #{tpu_custom_call.1} parent=31 // pred_region
          %s184 = smul.u32 16, %s14
          %p185 = scmp.lt.s32.totalorder %s184, 31
          %s186 = scalar_select %p185, %s184, 31
          %s187 = smul.addr %s186, 8
          %s188 = scalar_lea.vmem %s0, %s187
          %s189 = smul.u32 16, %s14
        $region36: #{tpu_custom_call.1} parent=31 // pred_fallthru
          _
      $region32: #{tpu_custom_call.1} parent=5 // pred_fallthru
        _
      %p190 = scmp.le.s32.totalorder 1, %s14
      %p191 = scmp.lt.s32.totalorder %s14, 3
      %p192 = pnand %p190, %p191
      %p193 = pneg %p192
      // Predicated region
      $region37: #{tpu_custom_call.1} parent=5 // pred_check
        _
      $region38: #{tpu_custom_call.1} parent=5 // pred_check_branch
        %195 = sbr.rel (%p192) target = $region40
      $region39: #{tpu_custom_call.1} parent=5 // pred_region
        %s196 = ssub.s32 %s14, 1
        %s197 = smul.u32 16, %s19
        %p198 = scmp.lt.s32.totalorder %s197, 31
        %s199 = scalar_select %p198, %s197, 31
        %s200 = smul.addr %s199, 8
        %s201 = scalar_lea.vmem %s0, %s200
        %p202 = pneg %p40
        %p203 = pneg %p37
        %p204 = pneg %p61
        %p205 = pneg %p58
        %p206 = pneg %p82
        %p207 = pneg %p79
        %p208 = pneg %p103
        %p209 = pneg %p100
        %p210 = pneg %p124
        %p211 = pneg %p121
        %p212 = pneg %p150
        %p213 = pneg %p147
        %s214 = sand.u32 %s137, 1
        %s215 = scalar_lea.sflag [#allocation3], %s214
        %s216 = sand.u32 %s137, 1
        %s217 = smul.addr %s216, 128
        %s218 = scalar_lea.vmem [#allocation2], %s217
        %s219 = smul.u32 16, %s19
        %p220 = scmp.lt.s32.totalorder %s219, 31
        %s221 = scalar_select %p220, %s219, 31
        %s222 = smul.addr %s221, 8
        %s223 = scalar_lea.vmem %s0, %s222
        %s224 = smul.u32 16, %s19
        %s225 = smul.u32 16, %s19
        %v226 = vld [vmem:[%s223] sm:$0xff]
        %v227 = vld [vmem:[%s223 + $0x8] sm:$0xff]
        %v228 = vld [vmem:[%s223 + $0x10] sm:$0xff]
        %v229 = vld [vmem:[%s223 + $0x18] sm:$0xff]
        %v230 = vld [vmem:[%s223 + $0x20] sm:$0xff]
        %v231 = vld [vmem:[%s223 + $0x28] sm:$0xff]
        %v232 = vld [vmem:[%s223 + $0x30] sm:$0xff]
        %v233 = vld [vmem:[%s223 + $0x38] sm:$0xff]
        %v234 = vld [vmem:[%s223 + $0x40] sm:$0xff]
        %v235 = vld [vmem:[%s223 + $0x48] sm:$0xff]
        %v236 = vld [vmem:[%s223 + $0x50] sm:$0xff]
        %v237 = vld [vmem:[%s223 + $0x58] sm:$0xff]
        %v238 = vld [vmem:[%s223 + $0x60] sm:$0xff]
        %v239 = vld [vmem:[%s223 + $0x68] sm:$0xff]
        %v240 = vld [vmem:[%s223 + $0x70] sm:$0xff]
        %v241 = vld [vmem:[%s223 + $0x78] sm:$0xff]
        %v242 = vld [vmem:[%s1] sm:$0xff]
        %v243 = vld [vmem:[%s1 + $0x8] sm:$0xff]
        %v244 = vld [vmem:[%s1 + $0x10] sm:$0xff]
        %v245 = vld [vmem:[%s1 + $0x18] sm:$0xff]
        %v246 = vld [vmem:[%s2] sm:$0x1]
        %v248 = vperm.slane %v246, 0
        %vm250 = vcmask 261120
        %v252 = vsel %vm250, %v226, 0
        %v255 = vsel %vm250, %v227, 0
        %v258 = vsel %vm250, %v228, 0
        %v261 = vsel %vm250, %v229, 0
        %v264 = vsel %vm250, %v230, 0
        %v267 = vsel %vm250, %v231, 0
        %v270 = vsel %vm250, %v232, 0
        %v273 = vsel %vm250, %v233, 0
        %v276 = vsel %vm250, %v234, 0
        %v279 = vsel %vm250, %v235, 0
        %v282 = vsel %vm250, %v236, 0
        %v285 = vsel %vm250, %v237, 0
        %v288 = vsel %vm250, %v238, 0
        %v291 = vsel %vm250, %v239, 0
        %v294 = vsel %vm250, %v240, 0
        %v297 = vsel %vm250, %v241, 0
        %299 = vmatpush.msra.mxu0 0.0
        %300 = vmatpush.msra.mxu0 0.0
        %301 = vmatpush.msra.mxu0 0.0
        %302 = vmatpush.msra.mxu0 0.0
        %303 = vmatpush.msra.mxu0 0.0
        %304 = vmatpush.msra.mxu0 0.0
        %305 = vmatpush.msra.mxu0 0.0
        %306 = vmatpush.msra.mxu0 0.0
        %307 = vmatpush.msra.mxu0 0.0
        %308 = vmatpush.msra.mxu0 0.0
        %309 = vmatpush.msra.mxu0 0.0
        %310 = vmatpush.msra.mxu0 0.0
        %311 = vmatpush.msra.mxu0 %v245
        %312 = vmatpush.msra.mxu0 %v244
        %313 = vmatpush.msra.mxu0 %v243
        %314 = vmatpush.msra.mxu0 %v242
        %315 = vmatmul.f32.gmra.mxu0 %v252
        %v316 = vpop.f32.mrf.mxu0
        %v317 = vadd.f32 %v248, %v316
        %318 = vmatmul.f32.gmra.mxu0 %v255
        %v319 = vpop.f32.mrf.mxu0
        %v320 = vadd.f32 %v248, %v319
        %321 = vmatmul.f32.gmra.mxu0 %v258
        %v322 = vpop.f32.mrf.mxu0
        %v323 = vadd.f32 %v248, %v322
        %324 = vmatmul.f32.gmra.mxu0 %v261
        %v325 = vpop.f32.mrf.mxu0
        %v326 = vadd.f32 %v248, %v325
        %327 = vmatmul.f32.gmra.mxu0 %v264
        %v328 = vpop.f32.mrf.mxu0
        %v329 = vadd.f32 %v248, %v328
        %330 = vmatmul.f32.gmra.mxu0 %v267
        %v331 = vpop.f32.mrf.mxu0
        %v332 = vadd.f32 %v248, %v331
        %333 = vmatmul.f32.gmra.mxu0 %v270
        %v334 = vpop.f32.mrf.mxu0
        %v335 = vadd.f32 %v248, %v334
        %336 = vmatmul.f32.gmra.mxu0 %v273
        %v337 = vpop.f32.mrf.mxu0
        %v338 = vadd.f32 %v248, %v337
        %339 = vmatmul.f32.gmra.mxu0 %v276
        %v340 = vpop.f32.mrf.mxu0
        %v341 = vadd.f32 %v248, %v340
        %342 = vmatmul.f32.gmra.mxu0 %v279
        %v343 = vpop.f32.mrf.mxu0
        %v344 = vadd.f32 %v248, %v343
        %345 = vmatmul.f32.gmra.mxu0 %v282
        %v346 = vpop.f32.mrf.mxu0
        %v347 = vadd.f32 %v248, %v346
        %348 = vmatmul.f32.gmra.mxu0 %v285
        %v349 = vpop.f32.mrf.mxu0
        %v350 = vadd.f32 %v248, %v349
        %351 = vmatmul.f32.gmra.mxu0 %v288
        %v352 = vpop.f32.mrf.mxu0
        %v353 = vadd.f32 %v248, %v352
        %354 = vmatmul.f32.gmra.mxu0 %v291
        %v355 = vpop.f32.mrf.mxu0
        %v356 = vadd.f32 %v248, %v355
        %357 = vmatmul.f32.gmra.mxu0 %v294
        %v358 = vpop.f32.mrf.mxu0
        %v359 = vadd.f32 %v248, %v358
        %360 = vmatmul.f32.gmra.mxu0 %v297
        %v361 = vpop.f32.mrf.mxu0
        %v362 = vadd.f32 %v248, %v361
        %363 = vdwg.mxu0
        %v364 = vmax.f32 %v317, 0.0
        %v365 = vmax.f32 %v320, 0.0
        %v366 = vmax.f32 %v323, 0.0
        %v367 = vmax.f32 %v326, 0.0
        %v368 = vmax.f32 %v329, 0.0
        %v369 = vmax.f32 %v332, 0.0
        %v370 = vmax.f32 %v335, 0.0
        %v371 = vmax.f32 %v338, 0.0
        %v372 = vmax.f32 %v341, 0.0
        %v373 = vmax.f32 %v344, 0.0
        %v374 = vmax.f32 %v347, 0.0
        %v375 = vmax.f32 %v350, 0.0
        %v376 = vmax.f32 %v353, 0.0
        %v377 = vmax.f32 %v356, 0.0
        %v378 = vmax.f32 %v359, 0.0
        %v379 = vmax.f32 %v362, 0.0
        %v380 = vld [vmem:[%s3] sm:$0xff]
        %v381 = vld [vmem:[%s3 + $0x8] sm:$0xff]
        %v382 = vld [vmem:[%s3 + $0x10] sm:$0xff]
        %v383 = vld [vmem:[%s3 + $0x18] sm:$0xff]
        %v384 = vld [vmem:[%s4] sm:$0x1]
        %v386 = vperm.slane %v384, 0
        %v389 = vsel %vm250, %v364, 0
        %v392 = vsel %vm250, %v365, 0
        %v395 = vsel %vm250, %v366, 0
        %v398 = vsel %vm250, %v367, 0
        %v401 = vsel %vm250, %v368, 0
        %v404 = vsel %vm250, %v369, 0
        %v407 = vsel %vm250, %v370, 0
        %v410 = vsel %vm250, %v371, 0
        %v413 = vsel %vm250, %v372, 0
        %v416 = vsel %vm250, %v373, 0
        %v419 = vsel %vm250, %v374, 0
        %v422 = vsel %vm250, %v375, 0
        %v425 = vsel %vm250, %v376, 0
        %v428 = vsel %vm250, %v377, 0
        %v431 = vsel %vm250, %v378, 0
        %v434 = vsel %vm250, %v379, 0
        %436 = vmatpush.msra.mxu0 0.0
        %437 = vmatpush.msra.mxu0 0.0
        %438 = vmatpush.msra.mxu0 0.0
        %439 = vmatpush.msra.mxu0 0.0
        %440 = vmatpush.msra.mxu0 0.0
        %441 = vmatpush.msra.mxu0 0.0
        %442 = vmatpush.msra.mxu0 0.0
        %443 = vmatpush.msra.mxu0 0.0
        %444 = vmatpush.msra.mxu0 0.0
        %445 = vmatpush.msra.mxu0 0.0
        %446 = vmatpush.msra.mxu0 0.0
        %447 = vmatpush.msra.mxu0 0.0
        %448 = vmatpush.msra.mxu0 %v383
        %449 = vmatpush.msra.mxu0 %v382
        %450 = vmatpush.msra.mxu0 %v381
        %451 = vmatpush.msra.mxu0 %v380
        %452 = vmatmul.f32.gmra.mxu0 %v389
        %v453 = vpop.f32.mrf.mxu0
        %v454 = vadd.f32 %v386, %v453
        %455 = vmatmul.f32.gmra.mxu0 %v392
        %v456 = vpop.f32.mrf.mxu0
        %v457 = vadd.f32 %v386, %v456
        %458 = vmatmul.f32.gmra.mxu0 %v395
        %v459 = vpop.f32.mrf.mxu0
        %v460 = vadd.f32 %v386, %v459
        %461 = vmatmul.f32.gmra.mxu0 %v398
        %v462 = vpop.f32.mrf.mxu0
        %v463 = vadd.f32 %v386, %v462
        %464 = vmatmul.f32.gmra.mxu0 %v401
        %v465 = vpop.f32.mrf.mxu0
        %v466 = vadd.f32 %v386, %v465
        %467 = vmatmul.f32.gmra.mxu0 %v404
        %v468 = vpop.f32.mrf.mxu0
        %v469 = vadd.f32 %v386, %v468
        %470 = vmatmul.f32.gmra.mxu0 %v407
        %v471 = vpop.f32.mrf.mxu0
        %v472 = vadd.f32 %v386, %v471
        %473 = vmatmul.f32.gmra.mxu0 %v410
        %v474 = vpop.f32.mrf.mxu0
        %v475 = vadd.f32 %v386, %v474
        %476 = vmatmul.f32.gmra.mxu0 %v413
        %v477 = vpop.f32.mrf.mxu0
        %v478 = vadd.f32 %v386, %v477
        %479 = vmatmul.f32.gmra.mxu0 %v416
        %v480 = vpop.f32.mrf.mxu0
        %v481 = vadd.f32 %v386, %v480
        %482 = vmatmul.f32.gmra.mxu0 %v419
        %v483 = vpop.f32.mrf.mxu0
        %v484 = vadd.f32 %v386, %v483
        %485 = vmatmul.f32.gmra.mxu0 %v422
        %v486 = vpop.f32.mrf.mxu0
        %v487 = vadd.f32 %v386, %v486
        %488 = vmatmul.f32.gmra.mxu0 %v425
        %v489 = vpop.f32.mrf.mxu0
        %v490 = vadd.f32 %v386, %v489
        %491 = vmatmul.f32.gmra.mxu0 %v428
        %v492 = vpop.f32.mrf.mxu0
        %v493 = vadd.f32 %v386, %v492
        %494 = vmatmul.f32.gmra.mxu0 %v431
        %v495 = vpop.f32.mrf.mxu0
        %v496 = vadd.f32 %v386, %v495
        %497 = vmatmul.f32.gmra.mxu0 %v434
        %v498 = vpop.f32.mrf.mxu0
        %v499 = vadd.f32 %v386, %v498
        %500 = vdwg.mxu0
        %501 = vmax.xlane.f32.xlu0 %v454
        %v502 = vpop.xlane.xlu0 %501
        %503 = vmax.xlane.f32.xlu0 %v457
        %v504 = vpop.xlane.xlu0 %503
        %505 = vmax.xlane.f32.xlu0 %v460
        %v506 = vpop.xlane.xlu0 %505
        %507 = vmax.xlane.f32.xlu0 %v463
        %v508 = vpop.xlane.xlu0 %507
        %509 = vmax.xlane.f32.xlu0 %v466
        %v510 = vpop.xlane.xlu0 %509
        %511 = vmax.xlane.f32.xlu0 %v469
        %v512 = vpop.xlane.xlu0 %511
        %513 = vmax.xlane.f32.xlu0 %v472
        %v514 = vpop.xlane.xlu0 %513
        %515 = vmax.xlane.f32.xlu0 %v475
        %v516 = vpop.xlane.xlu0 %515
        %517 = vmax.xlane.f32.xlu0 %v478
        %v518 = vpop.xlane.xlu0 %517
        %519 = vmax.xlane.f32.xlu0 %v481
        %v520 = vpop.xlane.xlu0 %519
        %521 = vmax.xlane.f32.xlu0 %v484
        %v522 = vpop.xlane.xlu0 %521
        %523 = vmax.xlane.f32.xlu0 %v487
        %v524 = vpop.xlane.xlu0 %523
        %525 = vmax.xlane.f32.xlu0 %v490
        %v526 = vpop.xlane.xlu0 %525
        %527 = vmax.xlane.f32.xlu0 %v493
        %v528 = vpop.xlane.xlu0 %527
        %529 = vmax.xlane.f32.xlu0 %v496
        %v530 = vpop.xlane.xlu0 %529
        %531 = vmax.xlane.f32.xlu0 %v499
        %v532 = vpop.xlane.xlu0 %531
        %v533 = vsub.f32 %v454, %v502
        %v534 = vsub.f32 %v457, %v504
        %v535 = vsub.f32 %v460, %v506
        %v536 = vsub.f32 %v463, %v508
        %v537 = vsub.f32 %v466, %v510
        %v538 = vsub.f32 %v469, %v512
        %v539 = vsub.f32 %v472, %v514
        %v540 = vsub.f32 %v475, %v516
        %v541 = vsub.f32 %v478, %v518
        %v542 = vsub.f32 %v481, %v520
        %v543 = vsub.f32 %v484, %v522
        %v544 = vsub.f32 %v487, %v524
        %v545 = vsub.f32 %v490, %v526
        %v546 = vsub.f32 %v493, %v528
        %v547 = vsub.f32 %v496, %v530
        %v548 = vsub.f32 %v499, %v532
        %v549 = vmul.f32 %v533, 1.442695
        %v550 = vpow.pop %v549
        %v551 = vmul.f32 %v534, 1.442695
        %v552 = vpow.pop %v551
        %v553 = vmul.f32 %v535, 1.442695
        %v554 = vpow.pop %v553
        %v555 = vmul.f32 %v536, 1.442695
        %v556 = vpow.pop %v555
        %v557 = vmul.f32 %v537, 1.442695
        %v558 = vpow.pop %v557
        %v559 = vmul.f32 %v538, 1.442695
        %v560 = vpow.pop %v559
        %v561 = vmul.f32 %v539, 1.442695
        %v562 = vpow.pop %v561
        %v563 = vmul.f32 %v540, 1.442695
        %v564 = vpow.pop %v563
        %v565 = vmul.f32 %v541, 1.442695
        %v566 = vpow.pop %v565
        %v567 = vmul.f32 %v542, 1.442695
        %v568 = vpow.pop %v567
        %v569 = vmul.f32 %v543, 1.442695
        %v570 = vpow.pop %v569
        %v571 = vmul.f32 %v544, 1.442695
        %v572 = vpow.pop %v571
        %v573 = vmul.f32 %v545, 1.442695
        %v574 = vpow.pop %v573
        %v575 = vmul.f32 %v546, 1.442695
        %v576 = vpow.pop %v575
        %v577 = vmul.f32 %v547, 1.442695
        %v578 = vpow.pop %v577
        %v579 = vmul.f32 %v548, 1.442695
        %v580 = vpow.pop %v579
        %581 = vadd.xlane.f32.xlu0 %v550
        %v582 = vpop.xlane.xlu0 %581
        %583 = vadd.xlane.f32.xlu0 %v552
        %v584 = vpop.xlane.xlu0 %583
        %585 = vadd.xlane.f32.xlu0 %v554
        %v586 = vpop.xlane.xlu0 %585
        %587 = vadd.xlane.f32.xlu0 %v556
        %v588 = vpop.xlane.xlu0 %587
        %589 = vadd.xlane.f32.xlu0 %v558
        %v590 = vpop.xlane.xlu0 %589
        %591 = vadd.xlane.f32.xlu0 %v560
        %v592 = vpop.xlane.xlu0 %591
        %593 = vadd.xlane.f32.xlu0 %v562
        %v594 = vpop.xlane.xlu0 %593
        %595 = vadd.xlane.f32.xlu0 %v564
        %v596 = vpop.xlane.xlu0 %595
        %597 = vadd.xlane.f32.xlu0 %v566
        %v598 = vpop.xlane.xlu0 %597
        %599 = vadd.xlane.f32.xlu0 %v568
        %v600 = vpop.xlane.xlu0 %599
        %601 = vadd.xlane.f32.xlu0 %v570
        %v602 = vpop.xlane.xlu0 %601
        %603 = vadd.xlane.f32.xlu0 %v572
        %v604 = vpop.xlane.xlu0 %603
        %605 = vadd.xlane.f32.xlu0 %v574
        %v606 = vpop.xlane.xlu0 %605
        %607 = vadd.xlane.f32.xlu0 %v576
        %v608 = vpop.xlane.xlu0 %607
        %609 = vadd.xlane.f32.xlu0 %v578
        %v610 = vpop.xlane.xlu0 %609
        %611 = vadd.xlane.f32.xlu0 %v580
        %v612 = vpop.xlane.xlu0 %611
        %v613 = vlog2.pop %v582
        %v614 = vmul.f32 %v613, 0.6931472
        %v615 = vlog2.pop %v584
        %v616 = vmul.f32 %v615, 0.6931472
        %v617 = vlog2.pop %v586
        %v618 = vmul.f32 %v617, 0.6931472
        %v619 = vlog2.pop %v588
        %v620 = vmul.f32 %v619, 0.6931472
        %v621 = vlog2.pop %v590
        %v622 = vmul.f32 %v621, 0.6931472
        %v623 = vlog2.pop %v592
        %v624 = vmul.f32 %v623, 0.6931472
        %v625 = vlog2.pop %v594
        %v626 = vmul.f32 %v625, 0.6931472
        %v627 = vlog2.pop %v596
        %v628 = vmul.f32 %v627, 0.6931472
        %v629 = vlog2.pop %v598
        %v630 = vmul.f32 %v629, 0.6931472
        %v631 = vlog2.pop %v600
        %v632 = vmul.f32 %v631, 0.6931472
        %v633 = vlog2.pop %v602
        %v634 = vmul.f32 %v633, 0.6931472
        %v635 = vlog2.pop %v604
        %v636 = vmul.f32 %v635, 0.6931472
        %v637 = vlog2.pop %v606
        %v638 = vmul.f32 %v637, 0.6931472
        %v639 = vlog2.pop %v608
        %v640 = vmul.f32 %v639, 0.6931472
        %v641 = vlog2.pop %v610
        %v642 = vmul.f32 %v641, 0.6931472
        %v643 = vlog2.pop %v612
        %v644 = vmul.f32 %v643, 0.6931472
        %v645 = vsub.f32 %v533, %v614
        %v646 = vsub.f32 %v534, %v616
        %v647 = vsub.f32 %v535, %v618
        %v648 = vsub.f32 %v536, %v620
        %v649 = vsub.f32 %v537, %v622
        %v650 = vsub.f32 %v538, %v624
        %v651 = vsub.f32 %v539, %v626
        %v652 = vsub.f32 %v540, %v628
        %v653 = vsub.f32 %v541, %v630
        %v654 = vsub.f32 %v542, %v632
        %v655 = vsub.f32 %v543, %v634
        %v656 = vsub.f32 %v544, %v636
        %v657 = vsub.f32 %v545, %v638
        %v658 = vsub.f32 %v546, %v640
        %v659 = vsub.f32 %v547, %v642
        %v660 = vsub.f32 %v548, %v644
        %661 = vst [vmem:[%s218] sm:$0xff] %v645
        %662 = vst [vmem:[%s218 + $0x8] sm:$0xff] %v646
        %663 = vst [vmem:[%s218 + $0x10] sm:$0xff] %v647
        %664 = vst [vmem:[%s218 + $0x18] sm:$0xff] %v648
        %665 = vst [vmem:[%s218 + $0x20] sm:$0xff] %v649
        %666 = vst [vmem:[%s218 + $0x28] sm:$0xff] %v650
        %667 = vst [vmem:[%s218 + $0x30] sm:$0xff] %v651
        %668 = vst [vmem:[%s218 + $0x38] sm:$0xff] %v652
        %669 = vst [vmem:[%s218 + $0x40] sm:$0xff] %v653
        %670 = vst [vmem:[%s218 + $0x48] sm:$0xff] %v654
        %671 = vst [vmem:[%s218 + $0x50] sm:$0xff] %v655
        %672 = vst [vmem:[%s218 + $0x58] sm:$0xff] %v656
        %673 = vst [vmem:[%s218 + $0x60] sm:$0xff] %v657
        %674 = vst [vmem:[%s218 + $0x68] sm:$0xff] %v658
        %675 = vst [vmem:[%s218 + $0x70] sm:$0xff] %v659
        %676 = vst [vmem:[%s218 + $0x78] sm:$0xff] %v660
        %s677 = sand.u32 %s137, 1
        %s678 = scalar_lea.sflag [#allocation3], %s677
        %s679 = sand.u32 %s137, 1
        %s680 = smul.addr %s679, 128
        %s681 = scalar_lea.vmem [#allocation2], %s680
        // Predicated region
        $region41: #{tpu_custom_call.1} parent=39 // pred_check
          %p682 = pneg %p147
        $region42: #{tpu_custom_call.1} parent=39 // pred_check_branch
          %684 = sbr.rel (%p682) target = $region44
        $region43: #{tpu_custom_call.1} parent=39 // pred_region
          %s685 = smul.u32 16, %s19
          %687 = vsyncadd %s678, 0
          %s688 = smul.addr %s685, 8
          %s689 = scalar_lea.hbm %s5, %s688
          %s690 = sshll.u32 %s681, 4
          %s691 = int_to_ptr.vmem [resolvable:$true] %s690
          %s692 = sshll.u32 %s689, 4
          %s693 = int_to_ptr.hbm [resolvable:$true] %s692
          %698 = dma.vmem_to_hbm [thread:$0]  %s691, 2048, %s693, %s678, 128, 128, 8
        $region44: #{tpu_custom_call.1} parent=39 // pred_fallthru
          _
      $region40: #{tpu_custom_call.1} parent=5 // pred_fallthru
        _
      %p699 = scmp.le.s32.totalorder 2, %s14
      // Predicated region
      $region45: #{tpu_custom_call.1} parent=5 // pred_check
        %p700 = pneg %p699
      $region46: #{tpu_custom_call.1} parent=5 // pred_check_branch
        %702 = sbr.rel (%p700) target = $region48
      $region47: #{tpu_custom_call.1} parent=5 // pred_region
        %s703 = ssub.s32 %s14, 2
        // Predicated region
        $region49: #{tpu_custom_call.1} parent=47 // pred_check
          %p704 = pneg %p153
        $region50: #{tpu_custom_call.1} parent=47 // pred_check_branch
          %706 = sbr.rel (%p704) target = $region52
        $region51: #{tpu_custom_call.1} parent=47 // pred_region
          %s707 = sand.u32 %s138, 1
          %s708 = scalar_lea.sflag [#allocation3], %s707
          %s709 = sand.u32 %s138, 1
          %s710 = smul.addr %s709, 128
          %s711 = scalar_lea.vmem [#allocation2], %s710
          %713 = dma.done %s708, 2048
        $region52: #{tpu_custom_call.1} parent=47 // pred_fallthru
          _
      $region48: #{tpu_custom_call.1} parent=5 // pred_fallthru
        _
    $region6: #{tpu_custom_call.1} parent=1 // loop_footer
      %s18 = sadd.s32 1, %s14
    $region7: #{tpu_custom_call.1} parent=1 // loop_footer_branch
      %13 = sbr.rel target = $region3
    $region8: #{tpu_custom_call.1} parent=1 // loop_exit
      _
    %714 = vsyncpa [#allocation3], 1
    %s715 = scalar_lea.sflag [#allocation3], 1
    %716 = vsyncpa %s715, 1

</llo_original>
